<compile_context>
chip_gen: v6e
topology: v6e:2x2x1
jax: 0.10.0
libtpu: 0.0.40
codegen_flags: <defaults>
</compile_context>

<pallas_src>
import functools
from math import sqrt

import jax
import jax.numpy as jnp
from jax import lax
from jax.experimental import pallas as pl
from jax.experimental.pallas import tpu as pltpu


# --------------------------- tile selection helper ---------------------------

def _pick_tile(n, target, aligns):
    """Largest tile <= target that divides n and is a multiple of one of
    `aligns` (tried in order); falls back to the full extent n (always legal
    for a BlockSpec)."""
    if n <= target:
        return n
    for a in aligns:
        t = (target // a) * a
        while t >= a:
            if n % t == 0:
                return t
            t -= a
    return n


# --------------------------- tiled linear (MXU) ------------------------------

def _matmul_kernel(x_ref, w_ref, o_ref, acc_ref):
    @pl.when(pl.program_id(2) == 0)
    def _init():
        acc_ref[...] = jnp.zeros(acc_ref.shape, acc_ref.dtype)

    acc_ref[...] += jnp.dot(x_ref[...], w_ref[...],
                            preferred_element_type=jnp.float32)

    @pl.when(pl.program_id(2) == pl.num_programs(2) - 1)
    def _store():
        o_ref[...] = acc_ref[...].astype(o_ref.dtype)


def _matmul_bias_kernel(x_ref, w_ref, b_ref, o_ref, acc_ref):
    @pl.when(pl.program_id(2) == 0)
    def _init():
        acc_ref[...] = jnp.zeros(acc_ref.shape, acc_ref.dtype)

    acc_ref[...] += jnp.dot(x_ref[...], w_ref[...],
                            preferred_element_type=jnp.float32)

    @pl.when(pl.program_id(2) == pl.num_programs(2) - 1)
    def _store():
        o_ref[...] = (acc_ref[...] + b_ref[...]).astype(o_ref.dtype)


def pallas_matmul(x, w, b=None, *, tm=256, tn=256, tk=256):
    """x: (M, K), w: (K, N), optional b: (N,) -> (M, N).

    Standard accumulator pattern: K axis last / "arbitrary", f32 VMEM
    accumulator, output written on the last K step.
    """
    M, K = x.shape
    K2, N = w.shape
    assert K == K2
    tm = _pick_tile(M, tm, (128, 8))
    tn = _pick_tile(N, tn, (128,))
    tk = _pick_tile(K, tk, (128,))
    grid = (M // tm, N // tn, K // tk)

    cost = pl.CostEstimate(
        flops=2 * M * N * K,
        transcendentals=0,
        bytes_accessed=4 * (M * K + K * N + M * N),
    )
    cparams = pltpu.CompilerParams(
        dimension_semantics=("parallel", "parallel", "arbitrary"),
        vmem_limit_bytes=64 * 1024 * 1024,
    )
    out_shape = jax.ShapeDtypeStruct((M, N), x.dtype)
    x_spec = pl.BlockSpec((tm, tk), lambda i, j, k: (i, k))
    w_spec = pl.BlockSpec((tk, tn), lambda i, j, k: (k, j))
    o_spec = pl.BlockSpec((tm, tn), lambda i, j, k: (i, j))
    scratch = [pltpu.VMEM((tm, tn), jnp.float32)]

    if b is None:
        return pl.pallas_call(
            _matmul_kernel,
            out_shape=out_shape,
            grid=grid,
            in_specs=[x_spec, w_spec],
            out_specs=o_spec,
            scratch_shapes=scratch,
            compiler_params=cparams,
            cost_estimate=cost,
        )(x, w)

    b2d = b.reshape(1, N)
    b_spec = pl.BlockSpec((1, tn), lambda i, j, k: (0, j))
    return pl.pallas_call(
        _matmul_bias_kernel,
        out_shape=out_shape,
        grid=grid,
        in_specs=[x_spec, w_spec, b_spec],
        out_specs=o_spec,
        scratch_shapes=scratch,
        compiler_params=cparams,
        cost_estimate=cost,
    )(x, w, b2d)


# ------------------------ flash attention core kernel ------------------------

def _flash_attn_kernel(q_ref, k_ref, v_ref, o_ref, m_scr, l_scr, acc_scr, *,
                       scale):
    """Online-softmax attention over one (batch, q-tile) block, all heads.

    Block shapes: q (1, H, TQ, d); k/v (1, H, TK, d); out (1, H, TQ, d).
    Scratch (persist across the KV grid axis): m (H, TQ, 1), l (H, TQ, 1),
    acc (H, TQ, d), all f32.
    """
    ki = pl.program_id(2)

    @pl.when(ki == 0)
    def _init():
        m_scr[...] = jnp.full(m_scr.shape, -jnp.inf, dtype=m_scr.dtype)
        l_scr[...] = jnp.zeros(l_scr.shape, l_scr.dtype)
        acc_scr[...] = jnp.zeros(acc_scr.shape, acc_scr.dtype)

    # Pre-scale q (H*TQ*d mults) instead of scaling the (H, TQ, TK) scores.
    q = q_ref[0].astype(jnp.float32) * scale        # (H, TQ, d)
    k = k_ref[0].astype(jnp.float32)                # (H, TK, d)
    v = v_ref[0].astype(jnp.float32)                # (H, TK, d)

    # scores: (H, TQ, TK) -- batched over heads, contracted over d.
    s = jnp.einsum("hqd,hkd->hqk", q, k, preferred_element_type=jnp.float32)

    m_prev = m_scr[...]                             # (H, TQ, 1)
    m_new = jnp.maximum(m_prev, jnp.max(s, axis=-1, keepdims=True))
    alpha = jnp.exp(m_prev - m_new)                 # rescale of old stats
    p = jnp.exp(s - m_new)                          # (H, TQ, TK)

    l_scr[...] = alpha * l_scr[...] + jnp.sum(p, axis=-1, keepdims=True)
    acc_scr[...] = alpha * acc_scr[...] + jnp.einsum(
        "hqk,hkd->hqd", p, v, preferred_element_type=jnp.float32)
    m_scr[...] = m_new

    @pl.when(ki == pl.num_programs(2) - 1)
    def _finalize():
        inv_l = pl.reciprocal(l_scr[...], approx=True)   # EUP, once per block
        o_ref[0] = (acc_scr[...] * inv_l).astype(o_ref.dtype)


def pallas_flash_attention(q, k, v, scale, *, q_tile=256, kv_tile=256):
    """q: (B, H, Nq, d), k/v: (B, H, Nk, d) -> (B, H, Nq, d)."""
    B, H, Nq, d = q.shape
    _, _, Nk, _ = k.shape
    TQ = _pick_tile(Nq, q_tile, (128, 8))
    TK = _pick_tile(Nk, kv_tile, (128, 8))
    grid = (B, Nq // TQ, Nk // TK)

    kernel = functools.partial(_flash_attn_kernel, scale=scale)
    cost = pl.CostEstimate(
        flops=4 * B * H * Nq * Nk * d,
        transcendentals=B * H * Nq * Nk,
        bytes_accessed=4 * (q.size + k.size + v.size + q.size),
    )
    return pl.pallas_call(
        kernel,
        out_shape=jax.ShapeDtypeStruct((B, H, Nq, d), q.dtype),
        grid=grid,
        in_specs=[
            pl.BlockSpec((1, H, TQ, d), lambda b, qi, ki: (b, 0, qi, 0)),
            pl.BlockSpec((1, H, TK, d), lambda b, qi, ki: (b, 0, ki, 0)),
            pl.BlockSpec((1, H, TK, d), lambda b, qi, ki: (b, 0, ki, 0)),
        ],
        out_specs=pl.BlockSpec((1, H, TQ, d), lambda b, qi, ki: (b, 0, qi, 0)),
        scratch_shapes=[
            pltpu.VMEM((H, TQ, 1), jnp.float32),   # running max m
            pltpu.VMEM((H, TQ, 1), jnp.float32),   # running sum l
            pltpu.VMEM((H, TQ, d), jnp.float32),   # output accumulator
        ],
        compiler_params=pltpu.CompilerParams(
            dimension_semantics=("parallel", "parallel", "arbitrary"),
            vmem_limit_bytes=64 * 1024 * 1024,
        ),
        cost_estimate=cost,
    )(q, k, v)


# ------------------------------- module glue ---------------------------------

def init_attention_params(key, query_dim, context_dim=None, heads=8,
                          dim_head=64):
    context_dim = query_dim if context_dim is None else context_dim
    inner_dim = heads * dim_head
    k1, k2, k3, k4 = jax.random.split(key, 4)
    return {
        "wq": jax.random.normal(k1, (query_dim, inner_dim), jnp.float32)
        / sqrt(query_dim),
        "wkv": jax.random.normal(k2, (context_dim, 2 * inner_dim), jnp.float32)
        / sqrt(context_dim),
        "wo": jax.random.normal(k3, (inner_dim, query_dim), jnp.float32)
        / sqrt(inner_dim),
        "bo": 0.01 * jax.random.normal(k4, (query_dim,), jnp.float32),
    }


def attention_forward(params, x, context=None, *, heads, dim_head,
                      q_tile=256, kv_tile=256):
    """Pallas equivalent of Attention.forward (mask=None, topk=None, p=0)."""
    B, Nq, Dq = x.shape
    ctx = x if context is None else context
    _, Nk, Dc = ctx.shape
    inner = heads * dim_head
    scale = dim_head ** (-0.5)

    if context is None:
        # Fused q + kv projection: one tiled matmul instead of two.
        wqkv = jnp.concatenate([params["wq"], params["wkv"]], axis=1)
        qkv = pallas_matmul(x.reshape(B * Nq, Dq), wqkv)       # (B*Nq, 3*inner)
        q = qkv[:, :inner]
        k = qkv[:, inner:2 * inner]
        v = qkv[:, 2 * inner:]
    else:
        q = pallas_matmul(x.reshape(B * Nq, Dq), params["wq"])
        kv = pallas_matmul(ctx.reshape(B * Nk, Dc), params["wkv"])
        k, v = kv[:, :inner], kv[:, inner:]

    # rearrange 'b n (h d) -> b h n d'
    def split_heads(t, n):
        return t.reshape(B, n, heads, dim_head).transpose(0, 2, 1, 3)

    qh = split_heads(q, Nq)
    kh = split_heads(k, Nk)
    vh = split_heads(v, Nk)

    # flash-style attention core (scores, online softmax, weighted sum)
    out = pallas_flash_attention(qh, kh, vh, scale,
                                 q_tile=q_tile, kv_tile=kv_tile)

    # rearrange 'b h n d -> b n (h d)'
    out = out.transpose(0, 2, 1, 3).reshape(B * Nq, inner)

    # to_out projection (with bias)
    out = pallas_matmul(out, params["wo"], params["bo"])
    return out.reshape(B, Nq, Dq)


# ----------------------------- pure-JAX reference -----------------------------

def attention_reference(params, x, *, heads, dim_head):
    B, N, Dq = x.shape
    inner = heads * dim_head
    scale = dim_head ** (-0.5)
    q = x @ params["wq"]
    kv = x @ params["wkv"]
    k, v = kv[..., :inner], kv[..., inner:]

    def split_heads(t):
        return t.reshape(B, N, heads, dim_head).transpose(0, 2, 1, 3)

    q, k, v = map(split_heads, (q, k, v))
    sim = jnp.einsum("bhid,bhjd->bhij", q, k) * scale
    attn = jax.nn.softmax(sim, axis=-1)
    out = jnp.einsum("bhij,bhjd->bhid", attn, v)
    out = out.transpose(0, 2, 1, 3).reshape(B, N, inner)
    return out @ params["wo"] + params["bo"]


# ------------------------------------ main -------------------------------------

if __name__ == "__main__":
    key = jax.random.PRNGKey(0)

    # 1) tiled-matmul sanity check (exercises K-axis accumulation + bias)
    k1, k2, k3, key = jax.random.split(key, 4)
    xm = jax.random.normal(k1, (256, 512), jnp.float32)
    wm = jax.random.normal(k2, (512, 384), jnp.float32) / sqrt(512)
    bm = jax.random.normal(k3, (384,), jnp.float32)
    ym = jax.block_until_ready(pallas_matmul(xm, wm, bm, tm=128, tn=128, tk=128))
    assert jnp.allclose(ym, xm @ wm + bm, atol=1e-3, rtol=1e-3)

    # 2) small attention (single tile per axis) — module-consistent toy shapes
    B, N, query_dim, heads, dim_head = 2, 8, 32, 2, 16
    kx, kp, key = jax.random.split(key, 3)
    x = jax.random.normal(kx, (B, N, query_dim), jnp.float32)
    params = init_attention_params(kp, query_dim, heads=heads, dim_head=dim_head)
    out = jax.block_until_ready(
        attention_forward(params, x, heads=heads, dim_head=dim_head))
    ref = attention_reference(params, x, heads=heads, dim_head=dim_head)
    assert out.shape == (B, N, query_dim)
    # loose-ish tolerance covers the approx reciprocal in the softmax normalize
    assert jnp.allclose(out, ref, atol=2e-3, rtol=2e-3)

    # 3) attention with real tiling (2 q-tiles x 2 kv-tiles -> exercises the
    #    online-softmax accumulation across KV grid steps)
    B2, N2, qd2, h2, dh2 = 2, 256, 64, 2, 64
    kx2, kp2 = jax.random.split(key)
    x2 = jax.random.normal(kx2, (B2, N2, qd2), jnp.float32)
    params2 = init_attention_params(kp2, qd2, heads=h2, dim_head=dh2)
    out2 = jax.block_until_ready(
        attention_forward(params2, x2, heads=h2, dim_head=dh2,
                          q_tile=128, kv_tile=128))
    ref2 = attention_reference(params2, x2, heads=h2, dim_head=dh2)
    assert jnp.allclose(out2, ref2, atol=2e-3, rtol=2e-3)

    print("KERNEL_OK")
</pallas_src>

<mosaic_0001>
module attributes {stable_mosaic.version = 11 : i64} {
  func.func @_matmul_bias_kernel(%arg0: i32, %arg1: i32, %arg2: i32, %arg3: memref<128x128xf32, #tpu.memory_space<vmem>>, %arg4: memref<128x128xf32, #tpu.memory_space<vmem>>, %arg5: memref<1x128xf32, #tpu.memory_space<vmem>>, %arg6: memref<128x128xf32, #tpu.memory_space<vmem>>, %arg7: memref<128x128xf32, #tpu.memory_space<vmem>>) attributes {dimension_semantics = [#tpu.dimension_semantics<parallel>, #tpu.dimension_semantics<parallel>, #tpu.dimension_semantics<arbitrary>], iteration_bounds = array<i64: 2, 3, 4>, scalar_prefetch = 0 : i64, scratch_operands = 1 : i64, tpu.core_type = #tpu.core_type<tc>, window_params = [{transform_indices = @transform_0, window_bounds = array<i64: 128, 128>}, {transform_indices = @transform_1, window_bounds = array<i64: 128, 128>}, {transform_indices = @transform_2, window_bounds = array<i64: 1, 128>}, {transform_indices = @transform_3, window_bounds = array<i64: 128, 128>}]} {
    %c0_i32 = arith.constant 0 : i32
    %0 = arith.cmpi eq, %arg2, %c0_i32 : i32
    %1 = arith.extui %0 : i1 to i32
    %c0_i32_0 = arith.constant 0 : i32
    %2 = arith.cmpi ne, %1, %c0_i32_0 : i32
    scf.if %2 {
      %cst_9 = arith.constant 0.000000e+00 : f32
      %12 = vector.broadcast %cst_9 : f32 to vector<128x128xf32>
      %c0_10 = arith.constant 0 : index
      %c0_11 = arith.constant 0 : index
      %13 = vector.load %arg7[%c0_10, %c0_11] : memref<128x128xf32, #tpu.memory_space<vmem>>, vector<128x128xf32>
      tpu.vector_store %arg7[%c0_10, %c0_11], %12 {strides = array<i32>} : memref<128x128xf32, #tpu.memory_space<vmem>>, vector<128x128xf32>,
    } else {
    }
    %c0 = arith.constant 0 : index
    %c0_1 = arith.constant 0 : index
    %3 = vector.load %arg7[%c0, %c0_1] : memref<128x128xf32, #tpu.memory_space<vmem>>, vector<128x128xf32>
    %c0_2 = arith.constant 0 : index
    %c0_3 = arith.constant 0 : index
    %4 = vector.load %arg3[%c0_2, %c0_3] : memref<128x128xf32, #tpu.memory_space<vmem>>, vector<128x128xf32>
    %c0_4 = arith.constant 0 : index
    %c0_5 = arith.constant 0 : index
    %5 = vector.load %arg4[%c0_4, %c0_5] : memref<128x128xf32, #tpu.memory_space<vmem>>, vector<128x128xf32>
    %cst = arith.constant dense<0.000000e+00> : vector<128x128xf32>
    %6 = tpu.matmul %4, %5, %cst {dimension_numbers = #tpu.dot_dimension_numbers<[1], [0], [0], [1], [0, 0, 1, 1], [], []>} : vector<128x128xf32>, vector<128x128xf32>, vector<128x128xf32> -> vector<128x128xf32>
    %7 = arith.addf %3, %6 : vector<128x128xf32>
    %c0_6 = arith.constant 0 : index
    %c0_7 = arith.constant 0 : index
    %8 = vector.load %arg7[%c0_6, %c0_7] : memref<128x128xf32, #tpu.memory_space<vmem>>, vector<128x128xf32>
    tpu.vector_store %arg7[%c0_6, %c0_7], %7 {strides = array<i32>} : memref<128x128xf32, #tpu.memory_space<vmem>>, vector<128x128xf32>,
    %c3_i32 = arith.constant 3 : i32
    %9 = arith.cmpi eq, %arg2, %c3_i32 : i32
    %10 = arith.extui %9 : i1 to i32
    %c0_i32_8 = arith.constant 0 : i32
    %11 = arith.cmpi ne, %10, %c0_i32_8 : i32
    scf.if %11 {
      %c0_9 = arith.constant 0 : index
      %c0_10 = arith.constant 0 : index
      %12 = vector.load %arg7[%c0_9, %c0_10] : memref<128x128xf32, #tpu.memory_space<vmem>>, vector<128x128xf32>
      %c0_11 = arith.constant 0 : index
      %c0_12 = arith.constant 0 : index
      %13 = vector.load %arg5[%c0_11, %c0_12] : memref<1x128xf32, #tpu.memory_space<vmem>>, vector<1x128xf32>
      %14 = vector.broadcast %13 : vector<1x128xf32> to vector<128x128xf32>
      %15 = arith.addf %12, %14 : vector<128x128xf32>
      %c0_13 = arith.constant 0 : index
      %c0_14 = arith.constant 0 : index
      %16 = vector.load %arg6[%c0_13, %c0_14] : memref<128x128xf32, #tpu.memory_space<vmem>>, vector<128x128xf32>
      tpu.vector_store %arg6[%c0_13, %c0_14], %15 {strides = array<i32>} : memref<128x128xf32, #tpu.memory_space<vmem>>, vector<128x128xf32>,
    } else {
    }
    return
  }
  func.func @transform_0(%arg0: i32, %arg1: i32, %arg2: i32) -> (i32, i32) {
    %c0_i32 = arith.constant 0 : i32
    return %arg0, %arg2 : i32, i32
  }
  func.func @transform_1(%arg0: i32, %arg1: i32, %arg2: i32) -> (i32, i32) {
    %c0_i32 = arith.constant 0 : i32
    return %arg2, %arg1 : i32, i32
  }
  func.func @transform_2(%arg0: i32, %arg1: i32, %arg2: i32) -> (i32, i32) {
    %c0_i32 = arith.constant 0 : i32
    %c0_i32_0 = arith.constant 0 : i32
    return %c0_i32, %arg1 : i32, i32
  }
  func.func @transform_3(%arg0: i32, %arg1: i32, %arg2: i32) -> (i32, i32) {
    %c0_i32 = arith.constant 0 : i32
    return %arg0, %arg1 : i32, i32
  }
}

</mosaic_0001>

<llo_original>
// kernel: tpu_custom_call.1
$region0: #{tpu_custom_call.1}
  #allocation0 [shape = 'u32[]', space=smem, size = 0x4, offset = 0x4, fixed_abs, tag = 'smem constant byte address 0x4 - core index']
  #allocation1 [shape = 'u32[144,128]{1,0:T(1,128)}', space=vmem, size = 0x12000, scoped, tag = 'internal scratch']
  #allocation2 [shape = 'f32[128,128]{1,0:T(8,128)}', space=vmem, size = 0x10000, scoped, tag = 'scratch operand']
  %s0 = inlined_call_operand.hbm [shape: f32[256,512], index: 0, kind: input, shape index: {}]
  %s1 = inlined_call_operand.hbm [shape: f32[512,384], index: 1, kind: input, shape index: {}]
  %s2 = inlined_call_operand.vmem [shape: f32[1,384], index: 2, kind: input, shape index: {}]
  %s3 = inlined_call_operand.hbm [shape: f32[256,384], index: 3, kind: output, shape index: {}]
  %s4 = sld [smem:[#allocation0]]
  $region61: #{tpu_custom_call.1} parent=0
    _
  %s6 = ssub.s32 1, %s4
  %s7 = scalar_select 0, %s6, %s4
  $region1: #{tpu_custom_call.1} parent=0
    #allocation3 [shape = 'u8[131072]{0}', space=vmem, size = 0x20000, scoped, tag = 'input window, operand 0']
    #allocation4 [shape = 's32[2]{0}', space=sflag, size = 0x8, scoped, tag = 'scoped memory for tpu_custom_call.1']
    #allocation5 [shape = 's32[2]{0}', space=sflag, size = 0x8, scoped, tag = 'scoped memory for tpu_custom_call.1']
    #allocation6 [shape = 'u8[131072]{0}', space=vmem, size = 0x20000, scoped, tag = 'input window, operand 1']
    #allocation7 [shape = 's32[2]{0}', space=sflag, size = 0x8, scoped, tag = 'scoped memory for tpu_custom_call.1']
    #allocation8 [shape = 'u8[131072]{0}', space=vmem, size = 0x20000, scoped, tag = 'output window, operand 0']
    %8 = vsyncpa [#allocation4], 0
    %s9 = scalar_lea.sflag [#allocation4], 1
    %10 = vsyncpa %s9, 0
    %11 = vsyncpa [#allocation7], 0
    %s12 = scalar_lea.sflag [#allocation7], 1
    %13 = vsyncpa %s12, 0
    %14 = vsyncpa [#allocation5], 0
    %s15 = scalar_lea.sflag [#allocation5], 1
    %16 = vsyncpa %s15, 0
    loop: start=0, step=1, limit=26
    $region2: #{tpu_custom_call.1} parent=1 // loop_pre_header
      _
    $region3: #{tpu_custom_call.1} parent=1 // loop_header
      %s18 = sphi 0, %s22
      %p19 = scmp.ge.s32.totalorder %s18, 26
      %s25 = sphi 0, %s44
      %s26 = sphi 0, %s40
      %s27 = sphi 0, %s36
      %s28 = sphi 0, %s25
      %s29 = sphi 0, %s26
      %s30 = sphi 0, %s27
      %s31 = sphi 0, %s28
      %s32 = sphi 0, %s29
      %s33 = sphi 0, %s30
      %s49 = sphi 0, %s51
      %s52 = sphi 0, %s49
      %s53 = sphi 0, %s52
      %s69 = sphi 0, %s53
      %s77 = sphi 0, %s79
      %s80 = sphi 0, %s77
      %s81 = sphi 0, %s80
      %s97 = sphi 0, %s81
      %s103 = sphi 0, %s105
      %s106 = sphi 0, %s103
      %s107 = sphi 0, %s106
      %s123 = sphi 0, %s107
      %s131 = sphi 0, %s133
      %s134 = sphi 0, %s131
      %s135 = sphi 0, %s134
      %s151 = sphi 0, %s135
    $region4: #{tpu_custom_call.1} parent=1 // loop_header_branch
      %21 = sbr.rel (%p19) target = $region8
    $region5: #{tpu_custom_call.1} parent=1 // loop_body
      %s23 = ssub.s32 %s18, 1
      %s24 = ssub.s32 %s18, 2
      %s34 = sadd.s32 1, %s27
      %p35 = scmp.ge.s32.totalorder %s34, 4
      %s36 = scalar_select %p35, 0, %s34
      %s37 = sadd.s32 1, %s26
      %s38 = scalar_select %p35, %s37, %s26
      %p39 = scmp.ge.s32.totalorder %s38, 3
      %s40 = scalar_select %p39, 0, %s38
      %s41 = sadd.s32 1, %s25
      %s42 = scalar_select %p39, %s41, %s25
      %p43 = scmp.ge.s32.totalorder %s42, 2
      %s44 = scalar_select %p43, 0, %s42
      %s45 = ssub.s32 %s25, %s44
      %s46 = ssub.s32 %s27, %s36
      %s47 = sor.u32 %s45, %s46
      %p48 = scmp.eq.s32.totalorder %s47, 0
      %s50 = sadd.s32 %s49, 1
      %s51 = scalar_select %p48, %s49, %s50
      %p54 = pneg %p48
      %p55 = scmp.eq.s32.totalorder %s18, 23
      %p56 = por %p54, %p55
      %p57 = scmp.ne.s32.totalorder %s49, %s52
      %p58 = scmp.eq.s32.totalorder %s18, 0
      %p59 = por %p57, %p58
      %p60 = scmp.ne.s32.totalorder %s49, %s52
      %p61 = scmp.eq.s32.totalorder %s23, 23
      %p62 = por %p60, %p61
      %p63 = scmp.ne.s32.totalorder %s52, %s53
      %p64 = scmp.eq.s32.totalorder %s23, 0
      %p65 = por %p63, %p64
      %p66 = scmp.ne.s32.totalorder %s52, %s53
      %p67 = scmp.eq.s32.totalorder %s24, 23
      %p68 = por %p66, %p67
      %p70 = scmp.ne.s32.totalorder %s53, %s69
      %p71 = scmp.eq.s32.totalorder %s24, 0
      %p72 = por %p70, %p71
      %s73 = ssub.s32 %s27, %s36
      %s74 = ssub.s32 %s26, %s40
      %s75 = sor.u32 %s73, %s74
      %p76 = scmp.eq.s32.totalorder %s75, 0
      %s78 = sadd.s32 %s77, 1
      %s79 = scalar_select %p76, %s77, %s78
      %p82 = pneg %p76
      %p83 = scmp.eq.s32.totalorder %s18, 23
      %p84 = por %p82, %p83
      %p85 = scmp.ne.s32.totalorder %s77, %s80
      %p86 = scmp.eq.s32.totalorder %s18, 0
      %p87 = por %p85, %p86
      %p88 = scmp.ne.s32.totalorder %s77, %s80
      %p89 = scmp.eq.s32.totalorder %s23, 23
      %p90 = por %p88, %p89
      %p91 = scmp.ne.s32.totalorder %s80, %s81
      %p92 = scmp.eq.s32.totalorder %s23, 0
      %p93 = por %p91, %p92
      %p94 = scmp.ne.s32.totalorder %s80, %s81
      %p95 = scmp.eq.s32.totalorder %s24, 23
      %p96 = por %p94, %p95
      %p98 = scmp.ne.s32.totalorder %s81, %s97
      %p99 = scmp.eq.s32.totalorder %s24, 0
      %p100 = por %p98, %p99
      %s101 = ssub.s32 %s26, %s40
      %p102 = scmp.eq.s32.totalorder %s101, 0
      %s104 = sadd.s32 %s103, 1
      %s105 = scalar_select %p102, %s103, %s104
      %p108 = pneg %p102
      %p109 = scmp.eq.s32.totalorder %s18, 23
      %p110 = por %p108, %p109
      %p111 = scmp.ne.s32.totalorder %s103, %s106
      %p112 = scmp.eq.s32.totalorder %s18, 0
      %p113 = por %p111, %p112
      %p114 = scmp.ne.s32.totalorder %s103, %s106
      %p115 = scmp.eq.s32.totalorder %s23, 23
      %p116 = por %p114, %p115
      %p117 = scmp.ne.s32.totalorder %s106, %s107
      %p118 = scmp.eq.s32.totalorder %s23, 0
      %p119 = por %p117, %p118
      %p120 = scmp.ne.s32.totalorder %s106, %s107
      %p121 = scmp.eq.s32.totalorder %s24, 23
      %p122 = por %p120, %p121
      %p124 = scmp.ne.s32.totalorder %s107, %s123
      %p125 = scmp.eq.s32.totalorder %s24, 0
      %p126 = por %p124, %p125
      %s127 = ssub.s32 %s25, %s44
      %s128 = ssub.s32 %s26, %s40
      %s129 = sor.u32 %s127, %s128
      %p130 = scmp.eq.s32.totalorder %s129, 0
      %s132 = sadd.s32 %s131, 1
      %s133 = scalar_select %p130, %s131, %s132
      %p136 = pneg %p130
      %p137 = scmp.eq.s32.totalorder %s18, 23
      %p138 = por %p136, %p137
      %p139 = scmp.ne.s32.totalorder %s131, %s134
      %p140 = scmp.eq.s32.totalorder %s18, 0
      %p141 = por %p139, %p140
      %p142 = scmp.ne.s32.totalorder %s131, %s134
      %p143 = scmp.eq.s32.totalorder %s23, 23
      %p144 = por %p142, %p143
      %p145 = scmp.ne.s32.totalorder %s134, %s135
      %p146 = scmp.eq.s32.totalorder %s23, 0
      %p147 = por %p145, %p146
      %p148 = scmp.ne.s32.totalorder %s134, %s135
      %p149 = scmp.eq.s32.totalorder %s24, 23
      %p150 = por %p148, %p149
      %p152 = scmp.ne.s32.totalorder %s135, %s151
      %p153 = scmp.eq.s32.totalorder %s24, 0
      %p154 = por %p152, %p153
      %p155 = scmp.le.s32.totalorder 1, %s18
      %p156 = scmp.lt.s32.totalorder %s18, 25
      %p157 = pnand %p155, %p156
      %p158 = pneg %p157
      // Predicated region
      $region9: #{tpu_custom_call.1} parent=5 // pred_check
        _
      $region10: #{tpu_custom_call.1} parent=5 // pred_check_branch
        %160 = sbr.rel (%p157) target = $region12
      $region11: #{tpu_custom_call.1} parent=5 // pred_region
        %s161 = ssub.s32 %s18, 1
      $region12: #{tpu_custom_call.1} parent=5 // pred_fallthru
        _
      %p162 = scmp.lt.s32.totalorder %s18, 24
      // Predicated region
      $region13: #{tpu_custom_call.1} parent=5 // pred_check
        %p163 = pneg %p162
      $region14: #{tpu_custom_call.1} parent=5 // pred_check_branch
        %165 = sbr.rel (%p163) target = $region16
      $region15: #{tpu_custom_call.1} parent=5 // pred_region
        // Predicated region
        $region17: #{tpu_custom_call.1} parent=15 // pred_check
          %p166 = pneg %p59
        $region18: #{tpu_custom_call.1} parent=15 // pred_check_branch
          %168 = sbr.rel (%p166) target = $region20
        $region19: #{tpu_custom_call.1} parent=15 // pred_region
          %s169 = sand.u32 %s49, 1
          %s170 = scalar_lea.sflag [#allocation4], %s169
          %s171 = sand.u32 %s49, 1
          %s172 = smul.addr %s171, 128
          %s173 = scalar_lea.vmem [#allocation3], %s172
          %s174 = smul.u32 16, %s25
          %s176 = ssub.s32 2048, 2048
          %177 = vsyncadd %s170, %s176
          %s178 = smul.addr %s174, 4
          %s179 = sadd.s32 %s27, %s178
          %s180 = smul.addr %s179, 128
          %s181 = scalar_lea.hbm %s0, %s180
          %s182 = sshll.u32 %s173, 4
          %s183 = int_to_ptr.vmem [resolvable:$true] %s182
          %188 = dma.hbm_to_vmem [thread:$0]  %s181, 2048, %s183, %s170, 512, 128, 8
        $region20: #{tpu_custom_call.1} parent=15 // pred_fallthru
          _
        // Predicated region
        $region21: #{tpu_custom_call.1} parent=15 // pred_check
          %p189 = pneg %p87
        $region22: #{tpu_custom_call.1} parent=15 // pred_check_branch
          %191 = sbr.rel (%p189) target = $region24
        $region23: #{tpu_custom_call.1} parent=15 // pred_region
          %s192 = sand.u32 %s77, 1
          %s193 = scalar_lea.sflag [#allocation7], %s192
          %s194 = sand.u32 %s77, 1
          %s195 = smul.addr %s194, 128
          %s196 = scalar_lea.vmem [#allocation6], %s195
          %s197 = smul.u32 16, %s27
          %s199 = ssub.s32 2048, 2048
          %200 = vsyncadd %s193, %s199
          %s201 = smul.addr %s197, 3
          %s202 = sadd.s32 %s26, %s201
          %s203 = smul.addr %s202, 128
          %s204 = scalar_lea.hbm %s1, %s203
          %s205 = sshll.u32 %s196, 4
          %s206 = int_to_ptr.vmem [resolvable:$true] %s205
          %211 = dma.hbm_to_vmem [thread:$0]  %s204, 2048, %s206, %s193, 384, 128, 8
        $region24: #{tpu_custom_call.1} parent=15 // pred_fallthru
          _
        // Predicated region
        $region25: #{tpu_custom_call.1} parent=15 // pred_check
          %p212 = pneg %p113
        $region26: #{tpu_custom_call.1} parent=15 // pred_check_branch
          %214 = sbr.rel (%p212) target = $region28
        $region27: #{tpu_custom_call.1} parent=15 // pred_region
          %p215 = scmp.lt.s32.totalorder %s26, 2
          %s216 = scalar_select %p215, %s26, 2
          %s217 = scalar_lea.vmem %s2, %s216
        $region28: #{tpu_custom_call.1} parent=15 // pred_fallthru
          _
      $region16: #{tpu_custom_call.1} parent=5 // pred_fallthru
        _
      %p218 = scmp.le.s32.totalorder 1, %s18
      %p219 = scmp.lt.s32.totalorder %s18, 25
      %p220 = pnand %p218, %p219
      %p221 = pneg %p220
      // Predicated region
      $region29: #{tpu_custom_call.1} parent=5 // pred_check
        _
      $region30: #{tpu_custom_call.1} parent=5 // pred_check_branch
        %223 = sbr.rel (%p220) target = $region32
      $region31: #{tpu_custom_call.1} parent=5 // pred_region
        %s224 = ssub.s32 %s18, 1
        %s225 = sand.u32 %s52, 1
        %s226 = scalar_lea.sflag [#allocation4], %s225
        %s227 = sand.u32 %s52, 1
        %s228 = smul.addr %s227, 128
        %s229 = scalar_lea.vmem [#allocation3], %s228
        // Predicated region
        $region33: #{tpu_custom_call.1} parent=31 // pred_check
          %p230 = pneg %p65
        $region34: #{tpu_custom_call.1} parent=31 // pred_check_branch
          %232 = sbr.rel (%p230) target = $region36
        $region35: #{tpu_custom_call.1} parent=31 // pred_region
          %233 = dma.done %s226, 2048
        $region36: #{tpu_custom_call.1} parent=31 // pred_fallthru
          _
        %s234 = sand.u32 %s80, 1
        %s235 = scalar_lea.sflag [#allocation7], %s234
        %s236 = sand.u32 %s80, 1
        %s237 = smul.addr %s236, 128
        %s238 = scalar_lea.vmem [#allocation6], %s237
        // Predicated region
        $region37: #{tpu_custom_call.1} parent=31 // pred_check
          %p239 = pneg %p93
        $region38: #{tpu_custom_call.1} parent=31 // pred_check_branch
          %241 = sbr.rel (%p239) target = $region40
        $region39: #{tpu_custom_call.1} parent=31 // pred_region
          %242 = dma.done %s235, 2048
        $region40: #{tpu_custom_call.1} parent=31 // pred_fallthru
          _
        %s243 = sand.u32 %s52, 1
        %s244 = scalar_lea.sflag [#allocation4], %s243
        %s245 = sand.u32 %s52, 1
        %s246 = smul.addr %s245, 128
        %s247 = scalar_lea.vmem [#allocation3], %s246
        %p248 = pneg %p65
        %p249 = pneg %p62
        %s250 = sand.u32 %s80, 1
        %s251 = scalar_lea.sflag [#allocation7], %s250
        %s252 = sand.u32 %s80, 1
        %s253 = smul.addr %s252, 128
        %s254 = scalar_lea.vmem [#allocation6], %s253
        %p255 = pneg %p93
        %p256 = pneg %p90
        %p257 = scmp.lt.s32.totalorder %s29, 2
        %s258 = scalar_select %p257, %s29, 2
        %s259 = scalar_lea.vmem %s2, %s258
        %p260 = pneg %p119
        %p261 = pneg %p116
        %p262 = pneg %p147
        %p263 = pneg %p144
        %s264 = sand.u32 %s134, 1
        %s265 = scalar_lea.sflag [#allocation5], %s264
        %s266 = sand.u32 %s134, 1
        %s267 = smul.addr %s266, 128
        %s268 = scalar_lea.vmem [#allocation8], %s267
        %s269 = smul.u32 16, %s28
        %s270 = smul.u32 16, %s30
        %p271 = scmp.lt.s32.totalorder %s29, 2
        %s272 = scalar_select %p271, %s29, 2
        %s273 = scalar_lea.vmem %s2, %s272
        %s274 = smul.u32 16, %s28
        %p275 = scmp.eq.s32.totalorder %s30, 0
        // Predicated region
        $region41: #{tpu_custom_call.1} parent=31 // pred_check
          %p276 = pneg %p275
        $region42: #{tpu_custom_call.1} parent=31 // pred_check_branch
          %278 = sbr.rel (%p276) target = $region44
        $region43: #{tpu_custom_call.1} parent=31 // pred_region
          %279 = vst [vmem:[#allocation2] sm:$0xff] 0.0
          %280 = vst [vmem:[#allocation2 + $0x8] sm:$0xff] 0.0
          %281 = vst [vmem:[#allocation2 + $0x10] sm:$0xff] 0.0
          %282 = vst [vmem:[#allocation2 + $0x18] sm:$0xff] 0.0
          %283 = vst [vmem:[#allocation2 + $0x20] sm:$0xff] 0.0
          %284 = vst [vmem:[#allocation2 + $0x28] sm:$0xff] 0.0
          %285 = vst [vmem:[#allocation2 + $0x30] sm:$0xff] 0.0
          %286 = vst [vmem:[#allocation2 + $0x38] sm:$0xff] 0.0
          %287 = vst [vmem:[#allocation2 + $0x40] sm:$0xff] 0.0
          %288 = vst [vmem:[#allocation2 + $0x48] sm:$0xff] 0.0
          %289 = vst [vmem:[#allocation2 + $0x50] sm:$0xff] 0.0
          %290 = vst [vmem:[#allocation2 + $0x58] sm:$0xff] 0.0
          %291 = vst [vmem:[#allocation2 + $0x60] sm:$0xff] 0.0
          %292 = vst [vmem:[#allocation2 + $0x68] sm:$0xff] 0.0
          %293 = vst [vmem:[#allocation2 + $0x70] sm:$0xff] 0.0
          %294 = vst [vmem:[#allocation2 + $0x78] sm:$0xff] 0.0
        $region44: #{tpu_custom_call.1} parent=31 // pred_fallthru
          _
        %v295 = vld [vmem:[#allocation2] sm:$0xff]
        %v296 = vld [vmem:[#allocation2 + $0x8] sm:$0xff]
        %v297 = vld [vmem:[#allocation2 + $0x10] sm:$0xff]
        %v298 = vld [vmem:[#allocation2 + $0x18] sm:$0xff]
        %v299 = vld [vmem:[#allocation2 + $0x20] sm:$0xff]
        %v300 = vld [vmem:[#allocation2 + $0x28] sm:$0xff]
        %v301 = vld [vmem:[#allocation2 + $0x30] sm:$0xff]
        %v302 = vld [vmem:[#allocation2 + $0x38] sm:$0xff]
        %v303 = vld [vmem:[#allocation2 + $0x40] sm:$0xff]
        %v304 = vld [vmem:[#allocation2 + $0x48] sm:$0xff]
        %v305 = vld [vmem:[#allocation2 + $0x50] sm:$0xff]
        %v306 = vld [vmem:[#allocation2 + $0x58] sm:$0xff]
        %v307 = vld [vmem:[#allocation2 + $0x60] sm:$0xff]
        %v308 = vld [vmem:[#allocation2 + $0x68] sm:$0xff]
        %v309 = vld [vmem:[#allocation2 + $0x70] sm:$0xff]
        %v310 = vld [vmem:[#allocation2 + $0x78] sm:$0xff]
        %v311 = vld [vmem:[%s229] sm:$0xff]
        %v312 = vld [vmem:[%s229 + $0x8] sm:$0xff]
        %v313 = vld [vmem:[%s229 + $0x10] sm:$0xff]
        %v314 = vld [vmem:[%s229 + $0x18] sm:$0xff]
        %v315 = vld [vmem:[%s229 + $0x20] sm:$0xff]
        %v316 = vld [vmem:[%s229 + $0x28] sm:$0xff]
        %v317 = vld [vmem:[%s229 + $0x30] sm:$0xff]
        %v318 = vld [vmem:[%s229 + $0x38] sm:$0xff]
        %v319 = vld [vmem:[%s229 + $0x40] sm:$0xff]
        %v320 = vld [vmem:[%s229 + $0x48] sm:$0xff]
        %v321 = vld [vmem:[%s229 + $0x50] sm:$0xff]
        %v322 = vld [vmem:[%s229 + $0x58] sm:$0xff]
        %v323 = vld [vmem:[%s229 + $0x60] sm:$0xff]
        %v324 = vld [vmem:[%s229 + $0x68] sm:$0xff]
        %v325 = vld [vmem:[%s229 + $0x70] sm:$0xff]
        %v326 = vld [vmem:[%s229 + $0x78] sm:$0xff]
        %v327 = vld [vmem:[%s238] sm:$0xff]
        %v328 = vld [vmem:[%s238 + $0x8] sm:$0xff]
        %v329 = vld [vmem:[%s238 + $0x10] sm:$0xff]
        %v330 = vld [vmem:[%s238 + $0x18] sm:$0xff]
        %v331 = vld [vmem:[%s238 + $0x20] sm:$0xff]
        %v332 = vld [vmem:[%s238 + $0x28] sm:$0xff]
        %v333 = vld [vmem:[%s238 + $0x30] sm:$0xff]
        %v334 = vld [vmem:[%s238 + $0x38] sm:$0xff]
        %v335 = vld [vmem:[%s238 + $0x40] sm:$0xff]
        %v336 = vld [vmem:[%s238 + $0x48] sm:$0xff]
        %v337 = vld [vmem:[%s238 + $0x50] sm:$0xff]
        %v338 = vld [vmem:[%s238 + $0x58] sm:$0xff]
        %v339 = vld [vmem:[%s238 + $0x60] sm:$0xff]
        %v340 = vld [vmem:[%s238 + $0x68] sm:$0xff]
        %v341 = vld [vmem:[%s238 + $0x70] sm:$0xff]
        %v342 = vld [vmem:[%s238 + $0x78] sm:$0xff]
        %343 = vmatprep.subr.mxu0 0.0
        %344 = vmatpush1.msra.mxu0 %v342
        %345 = vmatprep.subr.mxu0 0.0
        %346 = vmatpush1.msra.mxu0 %v341
        %347 = vmatprep.subr.mxu0 0.0
        %348 = vmatpush1.msra.mxu0 %v340
        %349 = vmatprep.subr.mxu0 0.0
        %350 = vmatpush1.msra.mxu0 %v339
        %351 = vmatprep.subr.mxu0 0.0
        %352 = vmatpush1.msra.mxu0 %v338
        %353 = vmatprep.subr.mxu0 0.0
        %354 = vmatpush1.msra.mxu0 %v337
        %355 = vmatprep.subr.mxu0 0.0
        %356 = vmatpush1.msra.mxu0 %v336
        %357 = vmatprep.subr.mxu0 0.0
        %358 = vmatpush1.msra.mxu0 %v335
        %359 = vmatprep.subr.mxu0 0.0
        %360 = vmatpush1.msra.mxu0 %v334
        %361 = vmatprep.subr.mxu0 0.0
        %362 = vmatpush1.msra.mxu0 %v333
        %363 = vmatprep.subr.mxu0 0.0
        %364 = vmatpush1.msra.mxu0 %v332
        %365 = vmatprep.subr.mxu0 0.0
        %366 = vmatpush1.msra.mxu0 %v331
        %367 = vmatprep.subr.mxu0 0.0
        %368 = vmatpush1.msra.mxu0 %v330
        %369 = vmatprep.subr.mxu0 0.0
        %370 = vmatpush1.msra.mxu0 %v329
        %371 = vmatprep.subr.mxu0 0.0
        %372 = vmatpush1.msra.mxu0 %v328
        %373 = vmatprep.subr.mxu0 0.0
        %374 = vmatpush1.msra.mxu0 %v327
        %375 = vmatprep.subr.mxu0 0.0
        %376 = vmatpush2.msra.mxu0 0.0
        %377 = vmatprep.subr.mxu0 0.0
        %378 = vmatpush2.msra.mxu0 0.0
        %379 = vmatprep.subr.mxu0 0.0
        %380 = vmatpush2.msra.mxu0 0.0
        %381 = vmatprep.subr.mxu0 0.0
        %382 = vmatpush2.msra.mxu0 0.0
        %383 = vmatprep.subr.mxu0 0.0
        %384 = vmatpush2.msra.mxu0 0.0
        %385 = vmatprep.subr.mxu0 0.0
        %386 = vmatpush2.msra.mxu0 0.0
        %387 = vmatprep.subr.mxu0 0.0
        %388 = vmatpush2.msra.mxu0 0.0
        %389 = vmatprep.subr.mxu0 0.0
        %390 = vmatpush2.msra.mxu0 0.0
        %391 = vmatprep.subr.mxu0 0.0
        %392 = vmatpush2.msra.mxu0 0.0
        %393 = vmatprep.subr.mxu0 0.0
        %394 = vmatpush2.msra.mxu0 0.0
        %395 = vmatprep.subr.mxu0 0.0
        %396 = vmatpush2.msra.mxu0 0.0
        %397 = vmatprep.subr.mxu0 0.0
        %398 = vmatpush2.msra.mxu0 0.0
        %399 = vmatprep.subr.mxu0 0.0
        %400 = vmatpush2.msra.mxu0 0.0
        %401 = vmatprep.subr.mxu0 0.0
        %402 = vmatpush2.msra.mxu0 0.0
        %403 = vmatprep.subr.mxu0 0.0
        %404 = vmatpush2.msra.mxu0 0.0
        %405 = vmatprep.subr.mxu0 0.0
        %406 = vmatpush2.msra.mxu0 0.0
        %407 = vmatprep.mubr.f32.mxu0 0.0
        %408 = vmatmul.mubr.f32.gmra.mxu0 %v311
        %v409 = vpop.f32.mrf.mxu0
        %v410 = vadd.f32 0.0, %v409
        %v411 = vpop.f32.mrf.mxu0
        %412 = vmatprep.mubr.f32.mxu0 0.0
        %413 = vmatmul.mubr.f32.gmra.mxu0 %v312
        %v414 = vpop.f32.mrf.mxu0
        %v415 = vadd.f32 0.0, %v414
        %v416 = vpop.f32.mrf.mxu0
        %417 = vmatprep.mubr.f32.mxu0 0.0
        %418 = vmatmul.mubr.f32.gmra.mxu0 %v313
        %v419 = vpop.f32.mrf.mxu0
        %v420 = vadd.f32 0.0, %v419
        %v421 = vpop.f32.mrf.mxu0
        %422 = vmatprep.mubr.f32.mxu0 0.0
        %423 = vmatmul.mubr.f32.gmra.mxu0 %v314
        %v424 = vpop.f32.mrf.mxu0
        %v425 = vadd.f32 0.0, %v424
        %v426 = vpop.f32.mrf.mxu0
        %427 = vmatprep.mubr.f32.mxu0 0.0
        %428 = vmatmul.mubr.f32.gmra.mxu0 %v315
        %v429 = vpop.f32.mrf.mxu0
        %v430 = vadd.f32 0.0, %v429
        %v431 = vpop.f32.mrf.mxu0
        %432 = vmatprep.mubr.f32.mxu0 0.0
        %433 = vmatmul.mubr.f32.gmra.mxu0 %v316
        %v434 = vpop.f32.mrf.mxu0
        %v435 = vadd.f32 0.0, %v434
        %v436 = vpop.f32.mrf.mxu0
        %437 = vmatprep.mubr.f32.mxu0 0.0
        %438 = vmatmul.mubr.f32.gmra.mxu0 %v317
        %v439 = vpop.f32.mrf.mxu0
        %v440 = vadd.f32 0.0, %v439
        %v441 = vpop.f32.mrf.mxu0
        %442 = vmatprep.mubr.f32.mxu0 0.0
        %443 = vmatmul.mubr.f32.gmra.mxu0 %v318
        %v444 = vpop.f32.mrf.mxu0
        %v445 = vadd.f32 0.0, %v444
        %v446 = vpop.f32.mrf.mxu0
        %447 = vmatprep.mubr.f32.mxu0 0.0
        %448 = vmatmul.mubr.f32.gmra.mxu0 %v319
        %v449 = vpop.f32.mrf.mxu0
        %v450 = vadd.f32 0.0, %v449
        %v451 = vpop.f32.mrf.mxu0
        %452 = vmatprep.mubr.f32.mxu0 0.0
        %453 = vmatmul.mubr.f32.gmra.mxu0 %v320
        %v454 = vpop.f32.mrf.mxu0
        %v455 = vadd.f32 0.0, %v454
        %v456 = vpop.f32.mrf.mxu0
        %457 = vmatprep.mubr.f32.mxu0 0.0
        %458 = vmatmul.mubr.f32.gmra.mxu0 %v321
        %v459 = vpop.f32.mrf.mxu0
        %v460 = vadd.f32 0.0, %v459
        %v461 = vpop.f32.mrf.mxu0
        %462 = vmatprep.mubr.f32.mxu0 0.0
        %463 = vmatmul.mubr.f32.gmra.mxu0 %v322
        %v464 = vpop.f32.mrf.mxu0
        %v465 = vadd.f32 0.0, %v464
        %v466 = vpop.f32.mrf.mxu0
        %467 = vmatprep.mubr.f32.mxu0 0.0
        %468 = vmatmul.mubr.f32.gmra.mxu0 %v323
        %v469 = vpop.f32.mrf.mxu0
        %v470 = vadd.f32 0.0, %v469
        %v471 = vpop.f32.mrf.mxu0
        %472 = vmatprep.mubr.f32.mxu0 0.0
        %473 = vmatmul.mubr.f32.gmra.mxu0 %v324
        %v474 = vpop.f32.mrf.mxu0
        %v475 = vadd.f32 0.0, %v474
        %v476 = vpop.f32.mrf.mxu0
        %477 = vmatprep.mubr.f32.mxu0 0.0
        %478 = vmatmul.mubr.f32.gmra.mxu0 %v325
        %v479 = vpop.f32.mrf.mxu0
        %v480 = vadd.f32 0.0, %v479
        %v481 = vpop.f32.mrf.mxu0
        %482 = vmatprep.mubr.f32.mxu0 0.0
        %483 = vmatmul.mubr.f32.gmra.mxu0 %v326
        %v484 = vpop.f32.mrf.mxu0
        %v485 = vadd.f32 0.0, %v484
        %v486 = vpop.f32.mrf.mxu0
        %487 = vdwg.mxu0
        %v488 = vadd.f32 %v295, %v410
        %v489 = vadd.f32 %v296, %v415
        %v490 = vadd.f32 %v297, %v420
        %v491 = vadd.f32 %v298, %v425
        %v492 = vadd.f32 %v299, %v430
        %v493 = vadd.f32 %v300, %v435
        %v494 = vadd.f32 %v301, %v440
        %v495 = vadd.f32 %v302, %v445
        %v496 = vadd.f32 %v303, %v450
        %v497 = vadd.f32 %v304, %v455
        %v498 = vadd.f32 %v305, %v460
        %v499 = vadd.f32 %v306, %v465
        %v500 = vadd.f32 %v307, %v470
        %v501 = vadd.f32 %v308, %v475
        %v502 = vadd.f32 %v309, %v480
        %v503 = vadd.f32 %v310, %v485
        %504 = vst [vmem:[#allocation2] sm:$0xff] %v488
        %505 = vst [vmem:[#allocation2 + $0x8] sm:$0xff] %v489
        %506 = vst [vmem:[#allocation2 + $0x10] sm:$0xff] %v490
        %507 = vst [vmem:[#allocation2 + $0x18] sm:$0xff] %v491
        %508 = vst [vmem:[#allocation2 + $0x20] sm:$0xff] %v492
        %509 = vst [vmem:[#allocation2 + $0x28] sm:$0xff] %v493
        %510 = vst [vmem:[#allocation2 + $0x30] sm:$0xff] %v494
        %511 = vst [vmem:[#allocation2 + $0x38] sm:$0xff] %v495
        %512 = vst [vmem:[#allocation2 + $0x40] sm:$0xff] %v496
        %513 = vst [vmem:[#allocation2 + $0x48] sm:$0xff] %v497
        %514 = vst [vmem:[#allocation2 + $0x50] sm:$0xff] %v498
        %515 = vst [vmem:[#allocation2 + $0x58] sm:$0xff] %v499
        %516 = vst [vmem:[#allocation2 + $0x60] sm:$0xff] %v500
        %517 = vst [vmem:[#allocation2 + $0x68] sm:$0xff] %v501
        %518 = vst [vmem:[#allocation2 + $0x70] sm:$0xff] %v502
        %519 = vst [vmem:[#allocation2 + $0x78] sm:$0xff] %v503
        %p520 = scmp.eq.s32.totalorder %s30, 3
        // Predicated region
        $region45: #{tpu_custom_call.1} parent=31 // pred_check
          %p521 = pneg %p520
        $region46: #{tpu_custom_call.1} parent=31 // pred_check_branch
          %523 = sbr.rel (%p521) target = $region48
        $region47: #{tpu_custom_call.1} parent=31 // pred_region
          %v524 = vld [vmem:[#allocation2] sm:$0xff]
          %v525 = vld [vmem:[#allocation2 + $0x8] sm:$0xff]
          %v526 = vld [vmem:[#allocation2 + $0x10] sm:$0xff]
          %v527 = vld [vmem:[#allocation2 + $0x18] sm:$0xff]
          %v528 = vld [vmem:[#allocation2 + $0x20] sm:$0xff]
          %v529 = vld [vmem:[#allocation2 + $0x28] sm:$0xff]
          %v530 = vld [vmem:[#allocation2 + $0x30] sm:$0xff]
          %v531 = vld [vmem:[#allocation2 + $0x38] sm:$0xff]
          %v532 = vld [vmem:[#allocation2 + $0x40] sm:$0xff]
          %v533 = vld [vmem:[#allocation2 + $0x48] sm:$0xff]
          %v534 = vld [vmem:[#allocation2 + $0x50] sm:$0xff]
          %v535 = vld [vmem:[#allocation2 + $0x58] sm:$0xff]
          %v536 = vld [vmem:[#allocation2 + $0x60] sm:$0xff]
          %v537 = vld [vmem:[#allocation2 + $0x68] sm:$0xff]
          %v538 = vld [vmem:[#allocation2 + $0x70] sm:$0xff]
          %v539 = vld [vmem:[#allocation2 + $0x78] sm:$0xff]
          %v540 = vld [vmem:[%s273] sm:$0x1]
          %v542 = vlaneseq
          %v543 = vshrl.u32 %v542, 7
          %v544 = vsub.s32 0, %v543
          %v545 = vrot.slane %v540, %v544
          %v547 = vadd.f32 %v524, %v545
          %v548 = vadd.f32 %v525, %v545
          %v549 = vadd.f32 %v526, %v545
          %v550 = vadd.f32 %v527, %v545
          %v551 = vadd.f32 %v528, %v545
          %v552 = vadd.f32 %v529, %v545
          %v553 = vadd.f32 %v530, %v545
          %v554 = vadd.f32 %v531, %v545
          %v555 = vadd.f32 %v532, %v545
          %v556 = vadd.f32 %v533, %v545
          %v557 = vadd.f32 %v534, %v545
          %v558 = vadd.f32 %v535, %v545
          %v559 = vadd.f32 %v536, %v545
          %v560 = vadd.f32 %v537, %v545
          %v561 = vadd.f32 %v538, %v545
          %v562 = vadd.f32 %v539, %v545
          %563 = vst [vmem:[%s268] sm:$0xff] %v547
          %564 = vst [vmem:[%s268 + $0x8] sm:$0xff] %v548
          %565 = vst [vmem:[%s268 + $0x10] sm:$0xff] %v549
          %566 = vst [vmem:[%s268 + $0x18] sm:$0xff] %v550
          %567 = vst [vmem:[%s268 + $0x20] sm:$0xff] %v551
          %568 = vst [vmem:[%s268 + $0x28] sm:$0xff] %v552
          %569 = vst [vmem:[%s268 + $0x30] sm:$0xff] %v553
          %570 = vst [vmem:[%s268 + $0x38] sm:$0xff] %v554
          %571 = vst [vmem:[%s268 + $0x40] sm:$0xff] %v555
          %572 = vst [vmem:[%s268 + $0x48] sm:$0xff] %v556
          %573 = vst [vmem:[%s268 + $0x50] sm:$0xff] %v557
          %574 = vst [vmem:[%s268 + $0x58] sm:$0xff] %v558
          %575 = vst [vmem:[%s268 + $0x60] sm:$0xff] %v559
          %576 = vst [vmem:[%s268 + $0x68] sm:$0xff] %v560
          %577 = vst [vmem:[%s268 + $0x70] sm:$0xff] %v561
          %578 = vst [vmem:[%s268 + $0x78] sm:$0xff] %v562
        $region48: #{tpu_custom_call.1} parent=31 // pred_fallthru
          _
        %s579 = sand.u32 %s134, 1
        %s580 = scalar_lea.sflag [#allocation5], %s579
        %s581 = sand.u32 %s134, 1
        %s582 = smul.addr %s581, 128
        %s583 = scalar_lea.vmem [#allocation8], %s582
        // Predicated region
        $region49: #{tpu_custom_call.1} parent=31 // pred_check
          %p584 = pneg %p144
        $region50: #{tpu_custom_call.1} parent=31 // pred_check_branch
          %586 = sbr.rel (%p584) target = $region52
        $region51: #{tpu_custom_call.1} parent=31 // pred_region
          %s587 = smul.u32 16, %s28
          %s589 = ssub.s32 2048, 2048
          %590 = vsyncadd %s580, %s589
          %s591 = smul.addr %s587, 3
          %s592 = sadd.s32 %s29, %s591
          %s593 = smul.addr %s592, 128
          %s594 = scalar_lea.hbm %s3, %s593
          %s595 = sshll.u32 %s583, 4
          %s596 = int_to_ptr.vmem [resolvable:$true] %s595
          %601 = dma.vmem_to_hbm [thread:$0]  %s596, 2048, %s594, %s580, 128, 384, 8
        $region52: #{tpu_custom_call.1} parent=31 // pred_fallthru
          _
      $region32: #{tpu_custom_call.1} parent=5 // pred_fallthru
        _
      %p602 = scmp.le.s32.totalorder 2, %s18
      // Predicated region
      $region53: #{tpu_custom_call.1} parent=5 // pred_check
        %p603 = pneg %p602
      $region54: #{tpu_custom_call.1} parent=5 // pred_check_branch
        %605 = sbr.rel (%p603) target = $region56
      $region55: #{tpu_custom_call.1} parent=5 // pred_region
        %s606 = ssub.s32 %s18, 2
        // Predicated region
        $region57: #{tpu_custom_call.1} parent=55 // pred_check
          %p607 = pneg %p150
        $region58: #{tpu_custom_call.1} parent=55 // pred_check_branch
          %609 = sbr.rel (%p607) target = $region60
        $region59: #{tpu_custom_call.1} parent=55 // pred_region
          %s610 = sand.u32 %s135, 1
          %s611 = scalar_lea.sflag [#allocation5], %s610
          %s612 = sand.u32 %s135, 1
          %s613 = smul.addr %s612, 128
          %s614 = scalar_lea.vmem [#allocation8], %s613
          %615 = dma.done %s611, 2048
        $region60: #{tpu_custom_call.1} parent=55 // pred_fallthru
          _
      $region56: #{tpu_custom_call.1} parent=5 // pred_fallthru
        _
    $region6: #{tpu_custom_call.1} parent=1 // loop_footer
      %s22 = sadd.s32 1, %s18
    $region7: #{tpu_custom_call.1} parent=1 // loop_footer_branch
      %17 = sbr.rel target = $region3
    $region8: #{tpu_custom_call.1} parent=1 // loop_exit
      _
    %616 = vsyncpa [#allocation4], 1
    %s617 = scalar_lea.sflag [#allocation4], 1
    %618 = vsyncpa %s617, 1
    %619 = vsyncpa [#allocation7], 1
    %s620 = scalar_lea.sflag [#allocation7], 1
    %621 = vsyncpa %s620, 1
    %622 = vsyncpa [#allocation5], 1
    %s623 = scalar_lea.sflag [#allocation5], 1
    %624 = vsyncpa %s623, 1

</llo_original>
